<compile_context>
chip_gen: v7x
topology: tpu7x:2x2x1
jax: 0.10.0
libtpu: 0.0.40
codegen_flags: <defaults>
</compile_context>

<pallas_src>
import jax
import jax.numpy as jnp
from jax.experimental import pallas as pl
from jax.experimental.pallas import tpu as pltpu


def _round_up(x: int, m: int) -> int:
    return ((x + m - 1) // m) * m


def cls_head_kernel(x_ref, w1_ref, b1_ref, w2_ref, b2_ref, o_ref):
    # x_ref:  [tb, D]   CLS-token activations for this batch tile
    # w1_ref: [D, Hp]   b1_ref: [1, Hp]  (f32)
    # w2_ref: [Hp, Cp]  b2_ref: [1, Cp]  (f32)
    # o_ref:  [tb, Cp]  (f32)
    x = x_ref[...].astype(w1_ref.dtype)  # cast to MXU input dtype (bf16 default)
    # dense: x @ W1 + b1 (f32 accumulation on the MXU, f32 bias)
    h = jnp.dot(x, w1_ref[...], preferred_element_type=jnp.float32) + b1_ref[...]
    # activation_fn = tanh, f32 on the EUP (v5e has no bf16 VPU/EUP)
    h = jnp.tanh(h)
    # TODO(synk): dropout is identity in eval mode; training-mode RNG mask not emitted.
    # out_proj: h @ W2 + b2.  h is rounded to the MXU input dtype here (second
    # bf16 rounding step in the bf16 path); accumulation stays f32.
    out = jnp.dot(h.astype(w2_ref.dtype), w2_ref[...],
                  preferred_element_type=jnp.float32) + b2_ref[...]
    o_ref[...] = out.astype(o_ref.dtype)


def prepare_head_params(w1, b1, w2, b2, *, compute_dtype=jnp.bfloat16,
                        h_align=128, c_align=128):
    """One-time (init / load-time) padding + cast of the head parameters.

    Keeping this out of the per-call path avoids re-reading and re-writing
    every weight byte in HBM on each call (which would ~double the bytes moved
    by this memory-bound head).

    Weights are [in_dim, out_dim] (transpose of nn.Linear's [out, in]):
      w1: [D, H], b1: [H], w2: [H, C], b2: [C].

    h_align: pad inner_dim to this multiple.  128 fully feeds the v5e MXU;
    bump to 256 only if profiling shows the first matmul MXU-bound on v6e/v7x.
    """
    D, H = w1.shape
    H2, C = w2.shape
    assert H2 == H and b1.shape == (H,) and b2.shape == (C,)

    Hp = _round_up(H, h_align)
    Cp = _round_up(C, c_align)

    # Zero padding keeps the math exact: padded h columns are tanh(0) = 0 and
    # padded w2 rows/columns are 0, so logits[:, :C] are unchanged.
    w1p = jnp.zeros((D, Hp), compute_dtype).at[:, :H].set(w1.astype(compute_dtype))
    b1p = jnp.zeros((1, Hp), jnp.float32).at[:, :H].set(b1.astype(jnp.float32))
    w2p = jnp.zeros((Hp, Cp), compute_dtype).at[:H, :C].set(w2.astype(compute_dtype))
    b2p = jnp.zeros((1, Cp), jnp.float32).at[:, :C].set(b2.astype(jnp.float32))
    return {"w1": w1p, "b1": b1p, "w2": w2p, "b2": b2p, "num_classes": C}


def classification_head(features, params, *, block_b=128):
    """features: [B, T, D] -> logits [B, num_classes] (f32).

    `params` comes from `prepare_head_params` (already padded / cast)."""
    B, T, D = features.shape
    w1, b1, w2, b2 = params["w1"], params["b1"], params["w2"], params["b2"]
    C = params["num_classes"]
    Hp, Cp = w1.shape[1], w2.shape[1]
    assert w1.shape[0] == D

    # CLS token (features[:, 0, :]).  A tiny (B*D) contiguous slice keeps the
    # kernel's x tile lane-dense; for small D this beats a strided squeezed-T
    # DMA, and weight bytes dominate this head anyway.
    x = features[:, 0, :]

    # Batch tile: keep tiles large (per-step overhead ~0.35 us) but force >= 2
    # grid steps when B > 8 so both v7x TensorCores get work and the x/out DMA
    # of step i+1 hides under the compute of step i.
    if B <= 8:
        tb = B
    else:
        tb = min(block_b, _round_up(pl.cdiv(B, 2), 8))
    grid = (pl.cdiv(B, tb),)

    x_itemsize = jnp.dtype(x.dtype).itemsize
    w_itemsize = jnp.dtype(w1.dtype).itemsize

    cost = pl.CostEstimate(
        flops=2 * B * (D * Hp + Hp * Cp),
        transcendentals=B * Hp,
        bytes_accessed=(B * D * x_itemsize                  # CLS rows
                        + D * Hp * w_itemsize + Hp * 4      # dense W, b
                        + Hp * Cp * w_itemsize + Cp * 4     # out_proj W, b
                        + B * Cp * 4),                      # logits
    )

    # Working set: double-buffered x / out tiles, single-buffered weights,
    # f32 intermediates.  Set the scoped-VMEM limit explicitly (v5e default is
    # 16 MiB) with 2x headroom, capped at 64 MiB (v7x physical per-TC VMEM).
    working_set = (2 * tb * D * x_itemsize
                   + 2 * tb * Cp * 4
                   + D * Hp * w_itemsize + Hp * 4
                   + Hp * Cp * w_itemsize + Cp * 4
                   + tb * Hp * 4 + tb * Cp * 4)
    vmem_limit = int(min(64 * 1024 * 1024, max(32 * 1024 * 1024, 2 * working_set)))

    # Weights / biases: constant index_map (never re-fetched across grid steps)
    # + single-buffered so the pipeline doesn't allocate a useless 2nd buffer.
    def _resident(shape):
        return pl.BlockSpec(shape, lambda i: (0, 0), pipeline_mode=pl.Buffered(1))

    out = pl.pallas_call(
        cls_head_kernel,
        out_shape=jax.ShapeDtypeStruct((B, Cp), jnp.float32),
        grid=grid,
        in_specs=[
            pl.BlockSpec((tb, D), lambda i: (i, 0)),   # batch-tiled CLS rows
            _resident((D, Hp)),                        # w1
            _resident((1, Hp)),                        # b1
            _resident((Hp, Cp)),                       # w2
            _resident((1, Cp)),                        # b2
        ],
        out_specs=pl.BlockSpec((tb, Cp), lambda i: (i, 0)),
        compiler_params=pltpu.CompilerParams(
            # Batch axis is embarrassingly parallel -> megacore / dual-TC sharding.
            dimension_semantics=("parallel",),
            vmem_limit_bytes=vmem_limit,
        ),
        cost_estimate=cost,
    )(x, w1, b1, w2, b2)

    # Strip the lane padding (static slice; fused by XLA).
    return out[:, :C]


def reference(features, w1, b1, w2, b2):
    x = features[:, 0, :]
    h = jnp.tanh(x @ w1 + b1)
    return h @ w2 + b2


if __name__ == "__main__":
    # Small shapes consistent with the module's forward:
    # batch=2, seq=8, input_dim=32, inner_dim=32, num_classes=8
    B, T, D, H, C = 2, 8, 32, 32, 8

    key = jax.random.PRNGKey(0)
    k_feat, k_w1, k_b1, k_w2, k_b2, k_feat2 = jax.random.split(key, 6)

    features = jax.random.normal(k_feat, (B, T, D), dtype=jnp.float32)
    # Deterministic synthetic "init" of the Linear params.
    w1 = jax.random.normal(k_w1, (D, H), dtype=jnp.float32) * (1.0 / jnp.sqrt(D))
    b1 = jax.random.normal(k_b1, (H,), dtype=jnp.float32) * 0.01
    w2 = jax.random.normal(k_w2, (H, C), dtype=jnp.float32) * (1.0 / jnp.sqrt(H))
    b2 = jax.random.normal(k_b2, (C,), dtype=jnp.float32) * 0.01

    ref = reference(features, w1, b1, w2, b2)

    # --- f32 MXU-input path: near bit-exact vs the f32 reference ---
    params_f32 = prepare_head_params(w1, b1, w2, b2, compute_dtype=jnp.float32)
    out_f32 = jax.block_until_ready(classification_head(features, params_f32))
    assert out_f32.shape == (B, C), out_f32.shape
    assert jnp.allclose(out_f32, ref, atol=1e-5, rtol=1e-5), "f32 mismatch vs reference"

    # --- bf16 MXU-input path (default perf path): f32 accumulate / epilogue ---
    params_bf16 = prepare_head_params(w1, b1, w2, b2)  # compute_dtype=bf16 default
    out_bf16 = jax.block_until_ready(classification_head(features, params_bf16))
    assert out_bf16.shape == (B, C), out_bf16.shape
    assert jnp.allclose(out_bf16, ref, atol=5e-2, rtol=5e-2), "bf16 mismatch vs reference"

    # --- multi-step grid + ragged batch tail (B=20 -> tb=16, grid=(2,)) ---
    B2 = 20
    features2 = jax.random.normal(k_feat2, (B2, T, D), dtype=jnp.float32)
    ref2 = reference(features2, w1, b1, w2, b2)
    out2 = jax.block_until_ready(classification_head(features2, params_bf16))
    assert out2.shape == (B2, C), out2.shape
    assert jnp.allclose(out2, ref2, atol=5e-2, rtol=5e-2), "bf16 mismatch (ragged batch)"

    print("KERNEL_OK")
</pallas_src>

<mosaic_0001>
module attributes {stable_mosaic.version = 11 : i64} {
  func.func @cls_head_kernel(%arg0: i32, %arg1: memref<2x32xf32, #tpu.memory_space<vmem>>, %arg2: memref<32x128xf32, #tpu.memory_space<vmem>>, %arg3: memref<1x128xf32, #tpu.memory_space<vmem>>, %arg4: memref<128x128xf32, #tpu.memory_space<vmem>>, %arg5: memref<1x128xf32, #tpu.memory_space<vmem>>, %arg6: memref<2x128xf32, #tpu.memory_space<vmem>>) attributes {dimension_semantics = [#tpu.dimension_semantics<parallel>], iteration_bounds = array<i64: 1>, scalar_prefetch = 0 : i64, scratch_operands = 0 : i64, tpu.core_type = #tpu.core_type<tc>, window_params = [{transform_indices = @transform_0, window_bounds = array<i64: 2, 32>}, {pipeline_mode = #tpu.pipeline_mode<synchronous>, transform_indices = @transform_1, window_bounds = array<i64: 32, 128>}, {pipeline_mode = #tpu.pipeline_mode<synchronous>, transform_indices = @transform_2, window_bounds = array<i64: 1, 128>}, {pipeline_mode = #tpu.pipeline_mode<synchronous>, transform_indices = @transform_3, window_bounds = array<i64: 128, 128>}, {pipeline_mode = #tpu.pipeline_mode<synchronous>, transform_indices = @transform_4, window_bounds = array<i64: 1, 128>}, {transform_indices = @transform_5, window_bounds = array<i64: 2, 128>}]} {
    %c0 = arith.constant 0 : index
    %c0_0 = arith.constant 0 : index
    %0 = vector.load %arg1[%c0, %c0_0] : memref<2x32xf32, #tpu.memory_space<vmem>>, vector<2x32xf32>
    %c0_1 = arith.constant 0 : index
    %c0_2 = arith.constant 0 : index
    %1 = vector.load %arg2[%c0_1, %c0_2] : memref<32x128xf32, #tpu.memory_space<vmem>>, vector<32x128xf32>
    %cst = arith.constant dense<0.000000e+00> : vector<2x128xf32>
    %2 = tpu.matmul %0, %1, %cst {dimension_numbers = #tpu.dot_dimension_numbers<[1], [0], [0], [1], [0, 0, 1, 1], [], []>} : vector<2x32xf32>, vector<32x128xf32>, vector<2x128xf32> -> vector<2x128xf32>
    %c0_3 = arith.constant 0 : index
    %c0_4 = arith.constant 0 : index
    %3 = vector.load %arg3[%c0_3, %c0_4] : memref<1x128xf32, #tpu.memory_space<vmem>>, vector<1x128xf32>
    %4 = vector.broadcast %3 : vector<1x128xf32> to vector<2x128xf32>
    %5 = arith.addf %2, %4 : vector<2x128xf32>
    %6 = math.tanh %5 : vector<2x128xf32>
    %c0_5 = arith.constant 0 : index
    %c0_6 = arith.constant 0 : index
    %7 = vector.load %arg4[%c0_5, %c0_6] : memref<128x128xf32, #tpu.memory_space<vmem>>, vector<128x128xf32>
    %cst_7 = arith.constant dense<0.000000e+00> : vector<2x128xf32>
    %8 = tpu.matmul %6, %7, %cst_7 {dimension_numbers = #tpu.dot_dimension_numbers<[1], [0], [0], [1], [0, 0, 1, 1], [], []>} : vector<2x128xf32>, vector<128x128xf32>, vector<2x128xf32> -> vector<2x128xf32>
    %c0_8 = arith.constant 0 : index
    %c0_9 = arith.constant 0 : index
    %9 = vector.load %arg5[%c0_8, %c0_9] : memref<1x128xf32, #tpu.memory_space<vmem>>, vector<1x128xf32>
    %10 = vector.broadcast %9 : vector<1x128xf32> to vector<2x128xf32>
    %11 = arith.addf %8, %10 : vector<2x128xf32>
    %c0_10 = arith.constant 0 : index
    %c0_11 = arith.constant 0 : index
    %12 = vector.load %arg6[%c0_10, %c0_11] : memref<2x128xf32, #tpu.memory_space<vmem>>, vector<2x128xf32>
    tpu.vector_store %arg6[%c0_10, %c0_11], %11 {strides = array<i32>} : memref<2x128xf32, #tpu.memory_space<vmem>>, vector<2x128xf32>,
    return
  }
  func.func @transform_0(%arg0: i32) -> (i32, i32) {
    %c0_i32 = arith.constant 0 : i32
    %c0_i32_0 = arith.constant 0 : i32
    return %arg0, %c0_i32 : i32, i32
  }
  func.func @transform_1(%arg0: i32) -> (i32, i32) {
    %c0_i32 = arith.constant 0 : i32
    %c0_i32_0 = arith.constant 0 : i32
    %c0_i32_1 = arith.constant 0 : i32
    return %c0_i32, %c0_i32_0 : i32, i32
  }
  func.func @transform_2(%arg0: i32) -> (i32, i32) {
    %c0_i32 = arith.constant 0 : i32
    %c0_i32_0 = arith.constant 0 : i32
    %c0_i32_1 = arith.constant 0 : i32
    return %c0_i32, %c0_i32_0 : i32, i32
  }
  func.func @transform_3(%arg0: i32) -> (i32, i32) {
    %c0_i32 = arith.constant 0 : i32
    %c0_i32_0 = arith.constant 0 : i32
    %c0_i32_1 = arith.constant 0 : i32
    return %c0_i32, %c0_i32_0 : i32, i32
  }
  func.func @transform_4(%arg0: i32) -> (i32, i32) {
    %c0_i32 = arith.constant 0 : i32
    %c0_i32_0 = arith.constant 0 : i32
    %c0_i32_1 = arith.constant 0 : i32
    return %c0_i32, %c0_i32_0 : i32, i32
  }
  func.func @transform_5(%arg0: i32) -> (i32, i32) {
    %c0_i32 = arith.constant 0 : i32
    %c0_i32_0 = arith.constant 0 : i32
    return %arg0, %c0_i32 : i32, i32
  }
}

</mosaic_0001>

<llo_original>
// kernel: tpu_custom_call.1
$region0: #{tpu_custom_call.1}
  #allocation0 [shape = 'u32[]', space=smem, size = 0x4, offset = 0x4, fixed_abs, tag = 'smem constant byte address 0x4 - core index']
  #allocation1 [shape = 'u32[144,128]{1,0:T(1,128)}', space=vmem, size = 0x12000, scoped, tag = 'internal scratch']
  %s0 = inlined_call_operand.hbm [shape: f32[2,32], index: 0, kind: input, shape index: {}]
  %s1 = inlined_call_operand.hbm [shape: f32[32,128], index: 1, kind: input, shape index: {}]
  %s2 = inlined_call_operand.vmem [shape: f32[1,128], index: 2, kind: input, shape index: {}]
  %s3 = inlined_call_operand.hbm [shape: f32[128,128], index: 3, kind: input, shape index: {}]
  %s4 = inlined_call_operand.vmem [shape: f32[1,128], index: 4, kind: input, shape index: {}]
  %s5 = inlined_call_operand.hbm [shape: f32[2,128], index: 5, kind: output, shape index: {}]
  %s6 = sld [smem:[#allocation0]]
  $region42: #{tpu_custom_call.1} parent=0
    _
  %s8 = ssub.s32 1, %s6
  %s9 = scalar_select 0, %s8, %s6
  $region1: #{tpu_custom_call.1} parent=0
    #allocation2 [shape = 'u8[1024]{0}', space=vmem, size = 0x400, scoped, tag = 'input window, operand 0, single buffered']
    #allocation3 [shape = 's32[1]{0}', space=sflag, size = 0x4, scoped, tag = 'scoped memory for tpu_custom_call.1']
    #allocation4 [shape = 's32[1]{0}', space=sflag, size = 0x4, scoped, tag = 'scoped memory for tpu_custom_call.1']
    #allocation5 [shape = 'u8[16384]{0}', space=vmem, size = 0x4000, scoped, tag = 'input window, operand 1, single buffered']
    #allocation6 [shape = 's32[1]{0}', space=sflag, size = 0x4, scoped, tag = 'scoped memory for tpu_custom_call.1']
    #allocation7 [shape = 'u8[65536]{0}', space=vmem, size = 0x10000, scoped, tag = 'input window, operand 3, single buffered']
    #allocation8 [shape = 'u8[1024]{0}', space=vmem, size = 0x400, scoped, tag = 'output window, operand 0, single buffered']
    %10 = vsyncpa [#allocation3], 0
    %11 = vsyncpa [#allocation6], 0
    %12 = vsyncpa [#allocation4], 0
    // Predicated region
    $region2: #{tpu_custom_call.1} parent=1 // pred_check
      _
    $region3: #{tpu_custom_call.1} parent=1 // pred_check_branch
      %14 = sbr.rel (0) target = $region5
    $region4: #{tpu_custom_call.1} parent=1 // pred_region
      %s16 = ssub.s32 32, 32
      %17 = vsyncadd [#allocation3], %s16
      %s19 = sshll.u32 [#allocation2], 4
      %s20 = int_to_ptr.vmem [resolvable:$true] %s19
      %22 = dma.hbm_to_vmem [thread:$0]  %s0, 32, %s20, [#allocation3]
    $region5: #{tpu_custom_call.1} parent=1 // pred_fallthru
      _
    // Predicated region
    $region6: #{tpu_custom_call.1} parent=1 // pred_check
      _
    $region7: #{tpu_custom_call.1} parent=1 // pred_check_branch
      %24 = sbr.rel (0) target = $region9
    $region8: #{tpu_custom_call.1} parent=1 // pred_region
      %s26 = ssub.s32 512, 512
      %27 = vsyncadd [#allocation6], %s26
      %s28 = sshll.u32 [#allocation5], 4
      %s29 = int_to_ptr.vmem [resolvable:$true] %s28
      %34 = dma.hbm_to_vmem [thread:$0]  %s1, 512, %s29, [#allocation6], 128, 128, 8
    $region9: #{tpu_custom_call.1} parent=1 // pred_fallthru
      _
    // Predicated region
    $region10: #{tpu_custom_call.1} parent=1 // pred_check
      _
    $region11: #{tpu_custom_call.1} parent=1 // pred_check_branch
      %36 = sbr.rel (0) target = $region13
    $region12: #{tpu_custom_call.1} parent=1 // pred_region
      _
    $region13: #{tpu_custom_call.1} parent=1 // pred_fallthru
      _
    // Predicated region
    $region14: #{tpu_custom_call.1} parent=1 // pred_check
      _
    $region15: #{tpu_custom_call.1} parent=1 // pred_check_branch
      %38 = sbr.rel (0) target = $region17
    $region16: #{tpu_custom_call.1} parent=1 // pred_region
      %s40 = ssub.s32 2048, 2048
      %41 = vsyncadd [#allocation6], %s40
      %s42 = sshll.u32 [#allocation7], 4
      %s43 = int_to_ptr.vmem [resolvable:$true] %s42
      %48 = dma.hbm_to_vmem [thread:$0]  %s3, 2048, %s43, [#allocation6], 128, 128, 8
    $region17: #{tpu_custom_call.1} parent=1 // pred_fallthru
      _
    // Predicated region
    $region18: #{tpu_custom_call.1} parent=1 // pred_check
      _
    $region19: #{tpu_custom_call.1} parent=1 // pred_check_branch
      %50 = sbr.rel (0) target = $region21
    $region20: #{tpu_custom_call.1} parent=1 // pred_region
      _
    $region21: #{tpu_custom_call.1} parent=1 // pred_fallthru
      _
    // Predicated region
    $region22: #{tpu_custom_call.1} parent=1 // pred_check
      _
    $region23: #{tpu_custom_call.1} parent=1 // pred_check_branch
      %52 = sbr.rel (0) target = $region25
    $region24: #{tpu_custom_call.1} parent=1 // pred_region
      %53 = dma.done [#allocation3], 32
    $region25: #{tpu_custom_call.1} parent=1 // pred_fallthru
      _
    // Predicated region
    $region26: #{tpu_custom_call.1} parent=1 // pred_check
      _
    $region27: #{tpu_custom_call.1} parent=1 // pred_check_branch
      %55 = sbr.rel (0) target = $region29
    $region28: #{tpu_custom_call.1} parent=1 // pred_region
      %56 = dma.done [#allocation6], 512
    $region29: #{tpu_custom_call.1} parent=1 // pred_fallthru
      _
    // Predicated region
    $region30: #{tpu_custom_call.1} parent=1 // pred_check
      _
    $region31: #{tpu_custom_call.1} parent=1 // pred_check_branch
      %58 = sbr.rel (0) target = $region33
    $region32: #{tpu_custom_call.1} parent=1 // pred_region
      %59 = dma.done [#allocation6], 2048
    $region33: #{tpu_custom_call.1} parent=1 // pred_fallthru
      _
    %v60 = vld [vmem:[#allocation2] sm:$0x3]
    %v61 = vld [vmem:[#allocation5] sm:$0xff]
    %v62 = vld [vmem:[#allocation5 + $0x8] sm:$0xff]
    %v63 = vld [vmem:[#allocation5 + $0x10] sm:$0xff]
    %v64 = vld [vmem:[#allocation5 + $0x18] sm:$0xff]
    %v65 = vld [vmem:[%s2] sm:$0x1]
    %v67 = vlaneseq
    %v68 = vshrl.u32 %v67, 7
    %v69 = vsub.s32 0, %v68
    %v70 = vrot.slane %v65, %v69
    %vm72 = vcmask 261120
    %v74 = vsel %vm72, %v60, 0
    %76 = vmatprep.subr.mxu0 0.0
    %77 = vmatpush1.msra.mxu0 %v61
    %78 = vmatprep.subr.mxu0 0.0
    %79 = vmatpush1.msra.mxu0 %v62
    %80 = vmatprep.subr.mxu0 0.0
    %81 = vmatpush1.msra.mxu0 %v63
    %82 = vmatprep.subr.mxu0 0.0
    %83 = vmatpush1.msra.mxu0 %v64
    %84 = vmatprep.subr.mxu0 0.0
    %85 = vmatpush1.msra.mxu0 0.0
    %86 = vmatprep.subr.mxu0 0.0
    %87 = vmatpush1.msra.mxu0 0.0
    %88 = vmatprep.subr.mxu0 0.0
    %89 = vmatpush1.msra.mxu0 0.0
    %90 = vmatprep.subr.mxu0 0.0
    %91 = vmatpush1.msra.mxu0 0.0
    %92 = vmatprep.subr.mxu0 0.0
    %93 = vmatpush1.msra.mxu0 0.0
    %94 = vmatprep.subr.mxu0 0.0
    %95 = vmatpush1.msra.mxu0 0.0
    %96 = vmatprep.subr.mxu0 0.0
    %97 = vmatpush1.msra.mxu0 0.0
    %98 = vmatprep.subr.mxu0 0.0
    %99 = vmatpush1.msra.mxu0 0.0
    %100 = vmatprep.subr.mxu0 0.0
    %101 = vmatpush1.msra.mxu0 0.0
    %102 = vmatprep.subr.mxu0 0.0
    %103 = vmatpush1.msra.mxu0 0.0
    %104 = vmatprep.subr.mxu0 0.0
    %105 = vmatpush1.msra.mxu0 0.0
    %106 = vmatprep.subr.mxu0 0.0
    %107 = vmatpush1.msra.mxu0 0.0
    %108 = vmatprep.subr.mxu0 0.0
    %109 = vmatpush1.msra.mxu0 0.0
    %110 = vmatprep.subr.mxu0 0.0
    %111 = vmatpush1.msra.mxu0 0.0
    %112 = vmatprep.subr.mxu0 0.0
    %113 = vmatpush1.msra.mxu0 0.0
    %114 = vmatprep.subr.mxu0 0.0
    %115 = vmatpush1.msra.mxu0 0.0
    %116 = vmatprep.subr.mxu0 0.0
    %117 = vmatpush1.msra.mxu0 0.0
    %118 = vmatprep.subr.mxu0 0.0
    %119 = vmatpush1.msra.mxu0 0.0
    %120 = vmatprep.subr.mxu0 0.0
    %121 = vmatpush1.msra.mxu0 0.0
    %122 = vmatprep.subr.mxu0 0.0
    %123 = vmatpush1.msra.mxu0 0.0
    %124 = vmatprep.subr.mxu0 0.0
    %125 = vmatpush1.msra.mxu0 0.0
    %126 = vmatprep.subr.mxu0 0.0
    %127 = vmatpush1.msra.mxu0 0.0
    %128 = vmatprep.subr.mxu0 0.0
    %129 = vmatpush1.msra.mxu0 0.0
    %130 = vmatprep.subr.mxu0 0.0
    %131 = vmatpush1.msra.mxu0 0.0
    %132 = vmatprep.subr.mxu0 0.0
    %133 = vmatpush1.msra.mxu0 0.0
    %134 = vmatprep.subr.mxu0 0.0
    %135 = vmatpush1.msra.mxu0 0.0
    %136 = vmatprep.subr.mxu0 0.0
    %137 = vmatpush1.msra.mxu0 0.0
    %138 = vmatprep.subr.mxu0 0.0
    %139 = vmatpush1.msra.mxu0 0.0
    %140 = vmatprep.mubr.f32.mxu0 0.0
    %141 = vmatmul.mubr.f32.gmra.mrb[0].mxu0 %v74
    %v142 = vpop.f32.mrb[0].mxu0
    %v143 = vadd.f32 %v70, %v142
    %v144 = vpop.f32.mrb[0].mxu0
    %145 = vdwg.mxu0
    %v146 = vtanh.pop %v143
    %v147 = vld [vmem:[#allocation7] sm:$0xff]
    %v148 = vld [vmem:[#allocation7 + $0x8] sm:$0xff]
    %v149 = vld [vmem:[#allocation7 + $0x10] sm:$0xff]
    %v150 = vld [vmem:[#allocation7 + $0x18] sm:$0xff]
    %v151 = vld [vmem:[#allocation7 + $0x20] sm:$0xff]
    %v152 = vld [vmem:[#allocation7 + $0x28] sm:$0xff]
    %v153 = vld [vmem:[#allocation7 + $0x30] sm:$0xff]
    %v154 = vld [vmem:[#allocation7 + $0x38] sm:$0xff]
    %v155 = vld [vmem:[#allocation7 + $0x40] sm:$0xff]
    %v156 = vld [vmem:[#allocation7 + $0x48] sm:$0xff]
    %v157 = vld [vmem:[#allocation7 + $0x50] sm:$0xff]
    %v158 = vld [vmem:[#allocation7 + $0x58] sm:$0xff]
    %v159 = vld [vmem:[#allocation7 + $0x60] sm:$0xff]
    %v160 = vld [vmem:[#allocation7 + $0x68] sm:$0xff]
    %v161 = vld [vmem:[#allocation7 + $0x70] sm:$0xff]
    %v162 = vld [vmem:[#allocation7 + $0x78] sm:$0xff]
    %v163 = vld [vmem:[%s4] sm:$0x1]
    %v165 = vlaneseq
    %v166 = vshrl.u32 %v165, 7
    %v167 = vsub.s32 0, %v166
    %v168 = vrot.slane %v163, %v167
    %170 = vmatprep.subr.mxu0 0.0
    %171 = vmatpush1.msra.mxu0 %v147
    %172 = vmatprep.subr.mxu0 0.0
    %173 = vmatpush1.msra.mxu0 %v148
    %174 = vmatprep.subr.mxu0 0.0
    %175 = vmatpush1.msra.mxu0 %v149
    %176 = vmatprep.subr.mxu0 0.0
    %177 = vmatpush1.msra.mxu0 %v150
    %178 = vmatprep.subr.mxu0 0.0
    %179 = vmatpush1.msra.mxu0 %v151
    %180 = vmatprep.subr.mxu0 0.0
    %181 = vmatpush1.msra.mxu0 %v152
    %182 = vmatprep.subr.mxu0 0.0
    %183 = vmatpush1.msra.mxu0 %v153
    %184 = vmatprep.subr.mxu0 0.0
    %185 = vmatpush1.msra.mxu0 %v154
    %186 = vmatprep.subr.mxu0 0.0
    %187 = vmatpush1.msra.mxu0 %v155
    %188 = vmatprep.subr.mxu0 0.0
    %189 = vmatpush1.msra.mxu0 %v156
    %190 = vmatprep.subr.mxu0 0.0
    %191 = vmatpush1.msra.mxu0 %v157
    %192 = vmatprep.subr.mxu0 0.0
    %193 = vmatpush1.msra.mxu0 %v158
    %194 = vmatprep.subr.mxu0 0.0
    %195 = vmatpush1.msra.mxu0 %v159
    %196 = vmatprep.subr.mxu0 0.0
    %197 = vmatpush1.msra.mxu0 %v160
    %198 = vmatprep.subr.mxu0 0.0
    %199 = vmatpush1.msra.mxu0 %v161
    %200 = vmatprep.subr.mxu0 0.0
    %201 = vmatpush1.msra.mxu0 %v162
    %202 = vmatprep.subr.mxu0 0.0
    %203 = vmatpush1.msra.mxu0 0.0
    %204 = vmatprep.subr.mxu0 0.0
    %205 = vmatpush1.msra.mxu0 0.0
    %206 = vmatprep.subr.mxu0 0.0
    %207 = vmatpush1.msra.mxu0 0.0
    %208 = vmatprep.subr.mxu0 0.0
    %209 = vmatpush1.msra.mxu0 0.0
    %210 = vmatprep.subr.mxu0 0.0
    %211 = vmatpush1.msra.mxu0 0.0
    %212 = vmatprep.subr.mxu0 0.0
    %213 = vmatpush1.msra.mxu0 0.0
    %214 = vmatprep.subr.mxu0 0.0
    %215 = vmatpush1.msra.mxu0 0.0
    %216 = vmatprep.subr.mxu0 0.0
    %217 = vmatpush1.msra.mxu0 0.0
    %218 = vmatprep.subr.mxu0 0.0
    %219 = vmatpush1.msra.mxu0 0.0
    %220 = vmatprep.subr.mxu0 0.0
    %221 = vmatpush1.msra.mxu0 0.0
    %222 = vmatprep.subr.mxu0 0.0
    %223 = vmatpush1.msra.mxu0 0.0
    %224 = vmatprep.subr.mxu0 0.0
    %225 = vmatpush1.msra.mxu0 0.0
    %226 = vmatprep.subr.mxu0 0.0
    %227 = vmatpush1.msra.mxu0 0.0
    %228 = vmatprep.subr.mxu0 0.0
    %229 = vmatpush1.msra.mxu0 0.0
    %230 = vmatprep.subr.mxu0 0.0
    %231 = vmatpush1.msra.mxu0 0.0
    %232 = vmatprep.subr.mxu0 0.0
    %233 = vmatpush1.msra.mxu0 0.0
    %234 = vmatprep.mubr.f32.mxu0 0.0
    %235 = vmatmul.mubr.f32.gmra.mrb[0].mxu0 %v146
    %v236 = vpop.f32.mrb[0].mxu0
    %v237 = vadd.f32 %v168, %v236
    %v238 = vpop.f32.mrb[0].mxu0
    %239 = vdwg.mxu0
    %240 = vst [vmem:[#allocation8] sm:$0x3] %v237
    // Predicated region
    $region34: #{tpu_custom_call.1} parent=1 // pred_check
      _
    $region35: #{tpu_custom_call.1} parent=1 // pred_check_branch
      %242 = sbr.rel (0) target = $region37
    $region36: #{tpu_custom_call.1} parent=1 // pred_region
      %s244 = ssub.s32 32, 32
      %245 = vsyncadd [#allocation4], %s244
      %s247 = sshll.u32 [#allocation8], 4
      %s248 = int_to_ptr.vmem [resolvable:$true] %s247
      %250 = dma.vmem_to_hbm [thread:$0]  %s248, 32, %s5, [#allocation4]
    $region37: #{tpu_custom_call.1} parent=1 // pred_fallthru
      _
    // Predicated region
    $region38: #{tpu_custom_call.1} parent=1 // pred_check
      _
    $region39: #{tpu_custom_call.1} parent=1 // pred_check_branch
      %252 = sbr.rel (0) target = $region41
    $region40: #{tpu_custom_call.1} parent=1 // pred_region
      %253 = dma.done [#allocation4], 32
    $region41: #{tpu_custom_call.1} parent=1 // pred_fallthru
      _
    %254 = vsyncpa [#allocation3], 1
    %255 = vsyncpa [#allocation6], 1
    %256 = vsyncpa [#allocation4], 1

</llo_original>
